<compile_context>
chip_gen: v5e
topology: v5e:2x2
jax: 0.10.0
libtpu: 0.0.40
codegen_flags: <defaults>
</compile_context>

<pallas_src>
import jax
import jax.numpy as jnp
from jax import lax
from jax.experimental import pallas as pl
from jax.experimental.pallas import tpu as pltpu

# ----------------------------- model dims -----------------------------------
B = 2             # batch
T = 16            # sequence length
H = 32            # hidden_dim
H2 = H // 2       # 16  (Linear output / biaffine n_in)
D = H2 + 1        # 17  (bias-augmented biaffine dim)
P = 32            # augmented dim padded to a friendly width
NOUT = 2          # biaffine n_out
BT = B * T        # 32  (all tokens processed in a single kernel step)
OC = NOUT * T     # 32  (output columns per batch block, ordered y*2 + o)

# ------------------------- packed weight-slab layout -------------------------
SLAB_COLS = 2 * P          # 64
ROW_WLIN = 0               # rows   0: 32  fused linear weights              (H, 2P)
ROW_BIAS = 32              # row   32      fused linear bias (+ ones cols)   (1, 2P)
ROW_WBI = 40               # rows  40:104  zero-extended biaffine row stack  (2P, 2P)
ROW_PE = 104               # rows 104:136  even-column (o=0) permutation     (BT, B*OC)
ROW_PO = 136               # rows 136:168  odd-column  (o=1) permutation     (BT, B*OC)
SLAB_ROWS = 168


# ----------------------------- Pallas kernel --------------------------------
def speaker_match_kernel(x_ref, p_ref, out_ref):
    # x_ref : (BT, H), p_ref : (SLAB_ROWS, SLAB_COLS), out_ref : (BT, OC)
    x = x_ref[...]                                   # (32, 32)

    w_lin = p_ref[ROW_WLIN:ROW_WLIN + H, :]          # (32, 64)
    bias = p_ref[ROW_BIAS:ROW_BIAS + 1, :]           # (1, 64)
    w_bi = p_ref[ROW_WBI:ROW_WBI + 2 * P, :]         # (64, 64)  nonzero only in cols 32:64
    pe = p_ref[ROW_PE:ROW_PE + BT, :]                # (32, 64)
    po = p_ref[ROW_PO:ROW_PO + BT, :]                # (32, 64)

    # Fused mpl1/mpl2 linear for all B*T tokens; biaffine "ones" columns folded
    # into the bias (zero weight column).
    z = jnp.dot(x, w_lin, preferred_element_type=jnp.float32) + bias        # (32, 64)
    # LeakyReLU(0.1).  The ones / zero-pad trick needs leaky(1)==1, leaky(0)==0.
    z = jnp.maximum(z, 0.1 * z)

    x1a = z[:, 0:P]                                  # (32, 32) = [x1, 1, 0..]
    # The x2 half of z is consumed via the zero-extended biaffine weight below,
    # so no second slice of z is needed.

    # V[o*P + i, b*T + y] = (Wb_o @ x2_aug[b, y])_i   — one matmul for all tokens,
    # both output channels (row-stacked weights -> sublane-aligned slices later).
    dn = (((1,), (1,)), ((), ()))                    # contract last dims (no transpose)
    v = lax.dot_general(w_bi, z, dn, preferred_element_type=jnp.float32)    # (64, 32)

    # Interleave the two biaffine channels into (y*2 + o) column order per batch
    # block with constant permutation matmuls: keeps the final store lane-dense
    # and makes the wrapper's reshape to 'bxyo' a contiguous (free) reshape.
    vi = (jnp.dot(v[0:P, :], pe, preferred_element_type=jnp.float32)
          + jnp.dot(v[P:2 * P, :], po, preferred_element_type=jnp.float32))  # (32, 64)

    for b in range(B):                               # B == 2, statically unrolled
        x1b = x1a[b * T:(b + 1) * T, :]              # (16, 32)  sublane slice
        vib = vi[:, b * OC:(b + 1) * OC]             # (32, 32)  in-vreg lane slice
        out_ref[b * T:(b + 1) * T, :] = jnp.dot(
            x1b, vib, preferred_element_type=jnp.float32)


# ----------------------------- weight packing --------------------------------
def pack_params(w1, b1, w2, b2, w_bi):
    """Pack all SpeakerMatchLayer weights + constants into one (168, 64) slab."""
    slab = jnp.zeros((SLAB_ROWS, SLAB_COLS), jnp.float32)

    # Fused linear weights: columns [0:P) -> x1_aug, [P:2P) -> x2_aug.
    slab = slab.at[ROW_WLIN:ROW_WLIN + H, 0:H2].set(w1)
    slab = slab.at[ROW_WLIN:ROW_WLIN + H, P:P + H2].set(w2)
    # Bias row; also supplies the biaffine "ones" columns (weights are 0 there).
    slab = slab.at[ROW_BIAS, 0:H2].set(b1)
    slab = slab.at[ROW_BIAS, H2].set(1.0)
    slab = slab.at[ROW_BIAS, P:P + H2].set(b2)
    slab = slab.at[ROW_BIAS, P + H2].set(1.0)

    # Zero-extended biaffine row stack W' (2P, 2P):
    #   columns [0:P)  multiply the x1 half of z  -> zero
    #   columns [P:2P) multiply the x2 half of z  -> [Wb0_pad ; Wb1_pad]
    for o in range(NOUT):
        slab = slab.at[ROW_WBI + o * P:ROW_WBI + o * P + D, P:P + D].set(w_bi[o])

    # Constant column-interleave permutations: V column (b*T + y) ->
    # output column (b*2T + 2y + o).
    rows = jnp.arange(BT)
    cols_even = (rows // T) * (2 * T) + 2 * (rows % T)
    pe = jnp.zeros((BT, B * OC), jnp.float32).at[rows, cols_even].set(1.0)
    po = jnp.zeros((BT, B * OC), jnp.float32).at[rows, cols_even + 1].set(1.0)
    slab = slab.at[ROW_PE:ROW_PE + BT, :].set(pe)
    slab = slab.at[ROW_PO:ROW_PO + BT, :].set(po)
    return slab


# ----------------------------- wrapper ---------------------------------------
@jax.jit
def speaker_match(x, params_slab):
    b, t, h = x.shape
    x2d = x.reshape(b * t, h)                        # contiguous -> bitcast under jit

    flops = (2 * BT * H * (2 * P)                    # fused linear
             + 2 * (2 * P) * (2 * P) * BT            # V (biaffine row stack)
             + 2 * 2 * P * BT * (B * OC)             # two permutation matmuls
             + 2 * 2 * T * P * OC)                   # two per-batch score matmuls
    cost = pl.CostEstimate(
        flops=flops,
        transcendentals=0,
        bytes_accessed=(BT * H + SLAB_ROWS * SLAB_COLS + BT * OC) * 4,
    )

    out2d = pl.pallas_call(
        speaker_match_kernel,
        out_shape=jax.ShapeDtypeStruct((BT, OC), jnp.float32),
        grid_spec=pltpu.PrefetchScalarGridSpec(
            num_scalar_prefetch=0,
            grid=(1,),                               # single step: work << per-step overhead
            in_specs=[
                pl.BlockSpec((BT, H), lambda i: (0, 0)),                 # all tokens
                pl.BlockSpec((SLAB_ROWS, SLAB_COLS), lambda i: (0, 0)),  # weight slab
            ],
            out_specs=pl.BlockSpec((BT, OC), lambda i: (0, 0)),
        ),
        compiler_params=pltpu.CompilerParams(dimension_semantics=("arbitrary",)),
        cost_estimate=cost,
    )(x2d, params_slab)

    # Kernel column order is already (y*2 + o) within each (b, x) row, so this
    # reshape is contiguous (no transpose, no data movement) -> 'bxyo'.
    return out2d.reshape(b, t, t, NOUT)


# ----------------------------- pure-JAX reference ----------------------------
def reference(x, w1, b1, w2, b2, w_bi):
    leaky = lambda v: jnp.maximum(v, 0.1 * v)
    x1 = leaky(x @ w1 + b1)
    x2 = leaky(x @ w2 + b2)
    ones = jnp.ones(x1.shape[:-1] + (1,), x1.dtype)
    x1a = jnp.concatenate([x1, ones], axis=-1)
    x2a = jnp.concatenate([x2, ones], axis=-1)
    return jnp.einsum('bxi,oij,byj->bxyo', x1a, w_bi, x2a)


# ----------------------------- main -------------------------------------------
if __name__ == "__main__":
    key = jax.random.PRNGKey(0)
    kx, k1, kb1, k2, kb2, kbi = jax.random.split(key, 6)

    x = jax.random.normal(kx, (B, T, H), jnp.float32)

    lin_std = 1.0 / (H ** 0.5)
    w1 = jax.random.normal(k1, (H, H2), jnp.float32) * lin_std
    b1 = jax.random.normal(kb1, (H2,), jnp.float32) * 0.1
    w2 = jax.random.normal(k2, (H, H2), jnp.float32) * lin_std
    b2 = jax.random.normal(kb2, (H2,), jnp.float32) * 0.1
    xavier_std = (2.0 / (D + D)) ** 0.5
    w_bi = jax.random.normal(kbi, (NOUT, D, D), jnp.float32) * xavier_std

    slab = pack_params(w1, b1, w2, b2, w_bi)

    out = speaker_match(x, slab)
    jax.block_until_ready(out)

    ref = reference(x, w1, b1, w2, b2, w_bi)
    jax.block_until_ready(ref)

    assert out.shape == (B, T, T, NOUT)
    rel_err = float(jnp.max(jnp.abs(out - ref)) / (jnp.max(jnp.abs(ref)) + 1e-6))
    assert rel_err < 1e-4, f"mismatch vs reference: rel_err={rel_err}"

    print("KERNEL_OK")
</pallas_src>

<mosaic_0001>
module attributes {stable_mosaic.version = 11 : i64} {
  func.func @speaker_match_kernel(%arg0: i32, %arg1: memref<32x32xf32, #tpu.memory_space<vmem>>, %arg2: memref<168x64xf32, #tpu.memory_space<vmem>>, %arg3: memref<32x32xf32, #tpu.memory_space<vmem>>) attributes {dimension_semantics = [#tpu.dimension_semantics<arbitrary>], iteration_bounds = array<i64: 1>, scalar_prefetch = 0 : i64, scratch_operands = 0 : i64, tpu.core_type = #tpu.core_type<tc>, window_params = [{pipeline_mode = #tpu.pipeline_mode<synchronous>, transform_indices = @transform_0, window_bounds = array<i64: 32, 32>}, {pipeline_mode = #tpu.pipeline_mode<synchronous>, transform_indices = @transform_1, window_bounds = array<i64: 168, 64>}, {pipeline_mode = #tpu.pipeline_mode<synchronous>, transform_indices = @transform_2, window_bounds = array<i64: 32, 32>}]} {
    %c0 = arith.constant 0 : index
    %c0_0 = arith.constant 0 : index
    %0 = vector.load %arg1[%c0, %c0_0] : memref<32x32xf32, #tpu.memory_space<vmem>>, vector<32x32xf32>
    %c0_1 = arith.constant 0 : index
    %c0_2 = arith.constant 0 : index
    %1 = vector.load %arg2[%c0_1, %c0_2] : memref<168x64xf32, #tpu.memory_space<vmem>>, vector<32x64xf32>
    %c32 = arith.constant 32 : index
    %c0_3 = arith.constant 0 : index
    %2 = vector.load %arg2[%c32, %c0_3] : memref<168x64xf32, #tpu.memory_space<vmem>>, vector<1x64xf32>
    %c40 = arith.constant 40 : index
    %c0_4 = arith.constant 0 : index
    %3 = vector.load %arg2[%c40, %c0_4] : memref<168x64xf32, #tpu.memory_space<vmem>>, vector<64x64xf32>
    %c104 = arith.constant 104 : index
    %c0_5 = arith.constant 0 : index
    %4 = vector.load %arg2[%c104, %c0_5] : memref<168x64xf32, #tpu.memory_space<vmem>>, vector<32x64xf32>
    %c136 = arith.constant 136 : index
    %c0_6 = arith.constant 0 : index
    %5 = vector.load %arg2[%c136, %c0_6] : memref<168x64xf32, #tpu.memory_space<vmem>>, vector<32x64xf32>
    %cst = arith.constant dense<0.000000e+00> : vector<32x64xf32>
    %6 = tpu.matmul %0, %1, %cst {dimension_numbers = #tpu.dot_dimension_numbers<[1], [0], [0], [1], [0, 0, 1, 1], [], []>} : vector<32x32xf32>, vector<32x64xf32>, vector<32x64xf32> -> vector<32x64xf32>
    %7 = vector.broadcast %2 : vector<1x64xf32> to vector<32x64xf32>
    %8 = arith.addf %6, %7 : vector<32x64xf32>
    %cst_7 = arith.constant 1.000000e-01 : f32
    %9 = vector.broadcast %cst_7 : f32 to vector<32x64xf32>
    %10 = arith.mulf %9, %8 : vector<32x64xf32>
    %11 = arith.maximumf %8, %10 : vector<32x64xf32>
    %12 = vector.extract_strided_slice %11 {offsets = [0, 0], sizes = [32, 32], strides = [1, 1]} : vector<32x64xf32> to vector<32x32xf32>
    %cst_8 = arith.constant dense<0.000000e+00> : vector<64x32xf32>
    %13 = tpu.matmul %3, %11, %cst_8 {dimension_numbers = #tpu.dot_dimension_numbers<[1], [1], [0], [0], [0, 0, 1, 0], [], []>} : vector<64x64xf32>, vector<32x64xf32>, vector<64x32xf32> -> vector<64x32xf32>
    %14 = vector.extract_strided_slice %13 {offsets = [0, 0], sizes = [32, 32], strides = [1, 1]} : vector<64x32xf32> to vector<32x32xf32>
    %cst_9 = arith.constant dense<0.000000e+00> : vector<32x64xf32>
    %15 = tpu.matmul %14, %4, %cst_9 {dimension_numbers = #tpu.dot_dimension_numbers<[1], [0], [0], [1], [0, 0, 1, 1], [], []>} : vector<32x32xf32>, vector<32x64xf32>, vector<32x64xf32> -> vector<32x64xf32>
    %16 = vector.extract_strided_slice %13 {offsets = [32, 0], sizes = [32, 32], strides = [1, 1]} : vector<64x32xf32> to vector<32x32xf32>
    %cst_10 = arith.constant dense<0.000000e+00> : vector<32x64xf32>
    %17 = tpu.matmul %16, %5, %cst_10 {dimension_numbers = #tpu.dot_dimension_numbers<[1], [0], [0], [1], [0, 0, 1, 1], [], []>} : vector<32x32xf32>, vector<32x64xf32>, vector<32x64xf32> -> vector<32x64xf32>
    %18 = arith.addf %15, %17 : vector<32x64xf32>
    %19 = vector.extract_strided_slice %12 {offsets = [0, 0], sizes = [16, 32], strides = [1, 1]} : vector<32x32xf32> to vector<16x32xf32>
    %20 = vector.extract_strided_slice %18 {offsets = [0, 0], sizes = [32, 32], strides = [1, 1]} : vector<32x64xf32> to vector<32x32xf32>
    %cst_11 = arith.constant dense<0.000000e+00> : vector<16x32xf32>
    %21 = tpu.matmul %19, %20, %cst_11 {dimension_numbers = #tpu.dot_dimension_numbers<[1], [0], [0], [1], [0, 0, 1, 1], [], []>} : vector<16x32xf32>, vector<32x32xf32>, vector<16x32xf32> -> vector<16x32xf32>
    %c0_12 = arith.constant 0 : index
    %c0_13 = arith.constant 0 : index
    %22 = vector.load %arg3[%c0_12, %c0_13] : memref<32x32xf32, #tpu.memory_space<vmem>>, vector<16x32xf32>
    tpu.vector_store %arg3[%c0_12, %c0_13], %21 {strides = array<i32>} : memref<32x32xf32, #tpu.memory_space<vmem>>, vector<16x32xf32>,
    %23 = vector.extract_strided_slice %12 {offsets = [16, 0], sizes = [16, 32], strides = [1, 1]} : vector<32x32xf32> to vector<16x32xf32>
    %24 = vector.extract_strided_slice %18 {offsets = [0, 32], sizes = [32, 32], strides = [1, 1]} : vector<32x64xf32> to vector<32x32xf32>
    %cst_14 = arith.constant dense<0.000000e+00> : vector<16x32xf32>
    %25 = tpu.matmul %23, %24, %cst_14 {dimension_numbers = #tpu.dot_dimension_numbers<[1], [0], [0], [1], [0, 0, 1, 1], [], []>} : vector<16x32xf32>, vector<32x32xf32>, vector<16x32xf32> -> vector<16x32xf32>
    %c16 = arith.constant 16 : index
    %c0_15 = arith.constant 0 : index
    %26 = vector.load %arg3[%c16, %c0_15] : memref<32x32xf32, #tpu.memory_space<vmem>>, vector<16x32xf32>
    tpu.vector_store %arg3[%c16, %c0_15], %25 {strides = array<i32>} : memref<32x32xf32, #tpu.memory_space<vmem>>, vector<16x32xf32>,
    return
  }
  func.func @transform_0(%arg0: i32) -> (i32, i32) {
    %c0_i32 = arith.constant 0 : i32
    %c0_i32_0 = arith.constant 0 : i32
    %c0_i32_1 = arith.constant 0 : i32
    return %c0_i32, %c0_i32_0 : i32, i32
  }
  func.func @transform_1(%arg0: i32) -> (i32, i32) {
    %c0_i32 = arith.constant 0 : i32
    %c0_i32_0 = arith.constant 0 : i32
    %c0_i32_1 = arith.constant 0 : i32
    return %c0_i32, %c0_i32_0 : i32, i32
  }
  func.func @transform_2(%arg0: i32) -> (i32, i32) {
    %c0_i32 = arith.constant 0 : i32
    %c0_i32_0 = arith.constant 0 : i32
    %c0_i32_1 = arith.constant 0 : i32
    return %c0_i32, %c0_i32_0 : i32, i32
  }
}

</mosaic_0001>

<llo_original>
// kernel: speaker_match.1
$region0: #{speaker_match.1}
  #allocation0 [shape = 'u32[]', space=smem, size = 0x4, offset = 0x4, fixed_abs, tag = 'smem constant byte address 0x4 - core index']
  #allocation1 [shape = 'u32[72,128]{1,0:T(1,128)}', space=vmem, size = 0x9000, scoped, tag = 'internal scratch']
  %s0 = inlined_call_operand.vmem [shape: f32[32,32], index: 0, kind: input, shape index: {}]
  %s1 = inlined_call_operand.vmem [shape: f32[168,64], index: 1, kind: input, shape index: {}]
  %s2 = inlined_call_operand.vmem [shape: f32[32,32], index: 2, kind: output, shape index: {}]
  %s3 = sld [smem:[#allocation0]]
  $region18: #{speaker_match.1} parent=0
    _
  %s5 = ssub.s32 1, %s3
  %s6 = scalar_select 0, %s5, %s3
  // Predicated region
  $region2: #{speaker_match.1} parent=0 // pred_check
    _
  $region3: #{speaker_match.1} parent=0 // pred_check_branch
    %8 = sbr.rel (0) target = $region5
  $region4: #{speaker_match.1} parent=0 // pred_region
    _
  $region5: #{speaker_match.1} parent=0 // pred_fallthru
    _
  // Predicated region
  $region6: #{speaker_match.1} parent=0 // pred_check
    _
  $region7: #{speaker_match.1} parent=0 // pred_check_branch
    %10 = sbr.rel (0) target = $region9
  $region8: #{speaker_match.1} parent=0 // pred_region
    _
  $region9: #{speaker_match.1} parent=0 // pred_fallthru
    _
  %v11 = vld [vmem:[%s0] sm:$0xff]
  %v12 = vld [vmem:[%s0 + $0x8] sm:$0xff]
  %v13 = vld [vmem:[%s0 + $0x10] sm:$0xff]
  %v14 = vld [vmem:[%s0 + $0x18] sm:$0xff]
  %v15 = vld [vmem:[%s1] sm:$0xff]
  %v16 = vld [vmem:[%s1 + $0x8] sm:$0xff]
  %v17 = vld [vmem:[%s1 + $0x10] sm:$0xff]
  %v18 = vld [vmem:[%s1 + $0x18] sm:$0xff]
  %v19 = vld [vmem:[%s1 + $0x20] sm:$0x1]
  %v20 = vld [vmem:[%s1 + $0x28] sm:$0xff]
  %v21 = vld [vmem:[%s1 + $0x30] sm:$0xff]
  %v22 = vld [vmem:[%s1 + $0x38] sm:$0xff]
  %v23 = vld [vmem:[%s1 + $0x40] sm:$0xff]
  %v24 = vld [vmem:[%s1 + $0x48] sm:$0xff]
  %v25 = vld [vmem:[%s1 + $0x50] sm:$0xff]
  %v26 = vld [vmem:[%s1 + $0x58] sm:$0xff]
  %v27 = vld [vmem:[%s1 + $0x60] sm:$0xff]
  %v28 = vld [vmem:[%s1 + $0x68] sm:$0xff]
  %v29 = vld [vmem:[%s1 + $0x70] sm:$0xff]
  %v30 = vld [vmem:[%s1 + $0x78] sm:$0xff]
  %v31 = vld [vmem:[%s1 + $0x80] sm:$0xff]
  %v32 = vld [vmem:[%s1 + $0x88] sm:$0xff]
  %v33 = vld [vmem:[%s1 + $0x90] sm:$0xff]
  %v34 = vld [vmem:[%s1 + $0x98] sm:$0xff]
  %v35 = vld [vmem:[%s1 + $0xa0] sm:$0xff]
  %v36 = vperm.slane %v19, 0
  %vm37 = vcmask 261120
  %v39 = vsel %vm37, %v11, 0
  %v42 = vsel %vm37, %v12, 0
  %v45 = vsel %vm37, %v13, 0
  %v48 = vsel %vm37, %v14, 0
  %50 = vmatpush.msra.mxu0 0.0
  %51 = vmatpush.msra.mxu0 0.0
  %52 = vmatpush.msra.mxu0 0.0
  %53 = vmatpush.msra.mxu0 0.0
  %54 = vmatpush.msra.mxu0 0.0
  %55 = vmatpush.msra.mxu0 0.0
  %56 = vmatpush.msra.mxu0 0.0
  %57 = vmatpush.msra.mxu0 0.0
  %58 = vmatpush.msra.mxu0 0.0
  %59 = vmatpush.msra.mxu0 0.0
  %60 = vmatpush.msra.mxu0 0.0
  %61 = vmatpush.msra.mxu0 0.0
  %62 = vmatpush.msra.mxu0 %v18
  %63 = vmatpush.msra.mxu0 %v17
  %64 = vmatpush.msra.mxu0 %v16
  %65 = vmatpush.msra.mxu0 %v15
  %66 = vmatmul.f32.gmra.mxu0 %v39
  %v67 = vpop.f32.mrf.mxu0
  %v68 = vadd.f32 %v36, %v67
  %69 = vmatmul.f32.gmra.mxu0 %v42
  %v70 = vpop.f32.mrf.mxu0
  %v71 = vadd.f32 %v36, %v70
  %72 = vmatmul.f32.gmra.mxu0 %v45
  %v73 = vpop.f32.mrf.mxu0
  %v74 = vadd.f32 %v36, %v73
  %75 = vmatmul.f32.gmra.mxu0 %v48
  %v76 = vpop.f32.mrf.mxu0
  %v77 = vadd.f32 %v36, %v76
  %78 = vdwg.mxu0
  %v79 = vmul.f32 %v68, 0.1
  %v80 = vmul.f32 %v71, 0.1
  %v81 = vmul.f32 %v74, 0.1
  %v82 = vmul.f32 %v77, 0.1
  %v83 = vmax.f32 %v68, %v79
  %v84 = vmax.f32 %v71, %v80
  %v85 = vmax.f32 %v74, %v81
  %v86 = vmax.f32 %v77, %v82
  %vm87 = vcmask 523264
  %v89 = vsel %vm87, %v20, 0
  %v92 = vsel %vm87, %v21, 0
  %v95 = vsel %vm87, %v22, 0
  %v98 = vsel %vm87, %v23, 0
  %v101 = vsel %vm87, %v24, 0
  %v104 = vsel %vm87, %v25, 0
  %v107 = vsel %vm87, %v26, 0
  %v110 = vsel %vm87, %v27, 0
  %v113 = vsel %vm87, %v83, 0
  %v116 = vsel %vm87, %v84, 0
  %v119 = vsel %vm87, %v85, 0
  %v122 = vsel %vm87, %v86, 0
  %124 = vmatpush.xpose.msra.mxu0 0.0
  %125 = vmatpush.xpose.msra.mxu0 0.0
  %126 = vmatpush.xpose.msra.mxu0 0.0
  %127 = vmatpush.xpose.msra.mxu0 0.0
  %128 = vmatpush.xpose.msra.mxu0 0.0
  %129 = vmatpush.xpose.msra.mxu0 0.0
  %130 = vmatpush.xpose.msra.mxu0 0.0
  %131 = vmatpush.xpose.msra.mxu0 0.0
  %132 = vmatpush.xpose.msra.mxu0 0.0
  %133 = vmatpush.xpose.msra.mxu0 0.0
  %134 = vmatpush.xpose.msra.mxu0 0.0
  %135 = vmatpush.xpose.msra.mxu0 0.0
  %136 = vmatpush.xpose.msra.mxu0 %v122
  %137 = vmatpush.xpose.msra.mxu0 %v119
  %138 = vmatpush.xpose.msra.mxu0 %v116
  %139 = vmatpush.xpose.msra.mxu0 %v113
  %140 = vmatmul.f32.gmra.mxu0 %v89
  %v141 = vpop.f32.mrf.mxu0
  %v142 = vadd.f32 0.0, %v141
  %143 = vmatmul.f32.gmra.mxu0 %v92
  %v144 = vpop.f32.mrf.mxu0
  %v145 = vadd.f32 0.0, %v144
  %146 = vmatmul.f32.gmra.mxu0 %v95
  %v147 = vpop.f32.mrf.mxu0
  %v148 = vadd.f32 0.0, %v147
  %149 = vmatmul.f32.gmra.mxu0 %v98
  %v150 = vpop.f32.mrf.mxu0
  %v151 = vadd.f32 0.0, %v150
  %152 = vmatmul.f32.gmra.mxu0 %v101
  %v153 = vpop.f32.mrf.mxu0
  %v154 = vadd.f32 0.0, %v153
  %155 = vmatmul.f32.gmra.mxu0 %v104
  %v156 = vpop.f32.mrf.mxu0
  %v157 = vadd.f32 0.0, %v156
  %158 = vmatmul.f32.gmra.mxu0 %v107
  %v159 = vpop.f32.mrf.mxu0
  %v160 = vadd.f32 0.0, %v159
  %161 = vmatmul.f32.gmra.mxu0 %v110
  %v162 = vpop.f32.mrf.mxu0
  %v163 = vadd.f32 0.0, %v162
  %164 = vdwg.mxu0
  %v166 = vsel %vm37, %v154, 0
  %v169 = vsel %vm37, %v157, 0
  %v172 = vsel %vm37, %v160, 0
  %v175 = vsel %vm37, %v163, 0
  %177 = vmatpush.msra.mxu0 0.0
  %178 = vmatpush.msra.mxu0 0.0
  %179 = vmatpush.msra.mxu0 0.0
  %180 = vmatpush.msra.mxu0 0.0
  %181 = vmatpush.msra.mxu0 0.0
  %182 = vmatpush.msra.mxu0 0.0
  %183 = vmatpush.msra.mxu0 0.0
  %184 = vmatpush.msra.mxu0 0.0
  %185 = vmatpush.msra.mxu0 0.0
  %186 = vmatpush.msra.mxu0 0.0
  %187 = vmatpush.msra.mxu0 0.0
  %188 = vmatpush.msra.mxu0 0.0
  %189 = vmatpush.msra.mxu0 %v35
  %190 = vmatpush.msra.mxu0 %v34
  %191 = vmatpush.msra.mxu0 %v33
  %192 = vmatpush.msra.mxu0 %v32
  %193 = vmatmul.f32.gmra.mxu0 %v166
  %v194 = vpop.f32.mrf.mxu0
  %v195 = vadd.f32 0.0, %v194
  %196 = vmatmul.f32.gmra.mxu0 %v169
  %v197 = vpop.f32.mrf.mxu0
  %v198 = vadd.f32 0.0, %v197
  %199 = vmatmul.f32.gmra.mxu0 %v172
  %v200 = vpop.f32.mrf.mxu0
  %v201 = vadd.f32 0.0, %v200
  %202 = vmatmul.f32.gmra.mxu0 %v175
  %v203 = vpop.f32.mrf.mxu0
  %v204 = vadd.f32 0.0, %v203
  %205 = vdwg.mxu0
  %v207 = vsel %vm37, %v142, 0
  %v210 = vsel %vm37, %v145, 0
  %v213 = vsel %vm37, %v148, 0
  %v216 = vsel %vm37, %v151, 0
  %218 = vmatpush.msra.mxu0 0.0
  %219 = vmatpush.msra.mxu0 0.0
  %220 = vmatpush.msra.mxu0 0.0
  %221 = vmatpush.msra.mxu0 0.0
  %222 = vmatpush.msra.mxu0 0.0
  %223 = vmatpush.msra.mxu0 0.0
  %224 = vmatpush.msra.mxu0 0.0
  %225 = vmatpush.msra.mxu0 0.0
  %226 = vmatpush.msra.mxu0 0.0
  %227 = vmatpush.msra.mxu0 0.0
  %228 = vmatpush.msra.mxu0 0.0
  %229 = vmatpush.msra.mxu0 0.0
  %230 = vmatpush.msra.mxu0 %v31
  %231 = vmatpush.msra.mxu0 %v30
  %232 = vmatpush.msra.mxu0 %v29
  %233 = vmatpush.msra.mxu0 %v28
  %234 = vmatmul.f32.gmra.mxu0 %v207
  %v235 = vpop.f32.mrf.mxu0
  %v236 = vadd.f32 %v195, %v235
  %237 = vmatmul.f32.gmra.mxu0 %v210
  %v238 = vpop.f32.mrf.mxu0
  %v239 = vadd.f32 %v198, %v238
  %240 = vmatmul.f32.gmra.mxu0 %v213
  %v241 = vpop.f32.mrf.mxu0
  %v242 = vadd.f32 %v201, %v241
  %243 = vmatmul.f32.gmra.mxu0 %v216
  %v244 = vpop.f32.mrf.mxu0
  %v245 = vadd.f32 %v204, %v244
  %246 = vdwg.mxu0
  %v247 = vsel %vm37, %v83, 0
  %v249 = vsel %vm37, %v84, 0
  %251 = vmatpush.msra.mxu0 0.0
  %252 = vmatpush.msra.mxu0 0.0
  %253 = vmatpush.msra.mxu0 0.0
  %254 = vmatpush.msra.mxu0 0.0
  %255 = vmatpush.msra.mxu0 0.0
  %256 = vmatpush.msra.mxu0 0.0
  %257 = vmatpush.msra.mxu0 0.0
  %258 = vmatpush.msra.mxu0 0.0
  %259 = vmatpush.msra.mxu0 0.0
  %260 = vmatpush.msra.mxu0 0.0
  %261 = vmatpush.msra.mxu0 0.0
  %262 = vmatpush.msra.mxu0 0.0
  %263 = vmatpush.msra.mxu0 %v245
  %264 = vmatpush.msra.mxu0 %v242
  %265 = vmatpush.msra.mxu0 %v239
  %266 = vmatpush.msra.mxu0 %v236
  %267 = vmatmul.f32.gmra.mxu0 %v247
  %v268 = vpop.f32.mrf.mxu0
  %v269 = vadd.f32 0.0, %v268
  %270 = vmatmul.f32.gmra.mxu0 %v249
  %v271 = vpop.f32.mrf.mxu0
  %v272 = vadd.f32 0.0, %v271
  %273 = vdwg.mxu0
  %274 = vst.msk [vmem:[%s2] sm:$0xff] %vm37, %v269
  %275 = vst.msk [vmem:[%s2 + $0x8] sm:$0xff] %vm37, %v272
  %280 = vrot.lane.b32.xlu0 %v236, 96
  %v281 = vpop.permute.xlu0 %280
  %282 = vrot.lane.b32.xlu0 %v239, 96
  %v283 = vpop.permute.xlu0 %282
  %284 = vrot.lane.b32.xlu0 %v242, 96
  %v285 = vpop.permute.xlu0 %284
  %286 = vrot.lane.b32.xlu0 %v245, 96
  %v287 = vpop.permute.xlu0 %286
  %v292 = vsel %vm37, %v85, 0
  %v294 = vsel %vm37, %v86, 0
  %296 = vmatpush.msra.mxu0 0.0
  %297 = vmatpush.msra.mxu0 0.0
  %298 = vmatpush.msra.mxu0 0.0
  %299 = vmatpush.msra.mxu0 0.0
  %300 = vmatpush.msra.mxu0 0.0
  %301 = vmatpush.msra.mxu0 0.0
  %302 = vmatpush.msra.mxu0 0.0
  %303 = vmatpush.msra.mxu0 0.0
  %304 = vmatpush.msra.mxu0 0.0
  %305 = vmatpush.msra.mxu0 0.0
  %306 = vmatpush.msra.mxu0 0.0
  %307 = vmatpush.msra.mxu0 0.0
  %308 = vmatpush.msra.mxu0 %v287
  %309 = vmatpush.msra.mxu0 %v285
  %310 = vmatpush.msra.mxu0 %v283
  %311 = vmatpush.msra.mxu0 %v281
  %312 = vmatmul.f32.gmra.mxu0 %v292
  %v313 = vpop.f32.mrf.mxu0
  %v314 = vadd.f32 0.0, %v313
  %315 = vmatmul.f32.gmra.mxu0 %v294
  %v316 = vpop.f32.mrf.mxu0
  %v317 = vadd.f32 0.0, %v316
  %318 = vdwg.mxu0
  %319 = vst.msk [vmem:[%s2 + $0x10] sm:$0xff] %vm37, %v314
  %320 = vst.msk [vmem:[%s2 + $0x18] sm:$0xff] %vm37, %v317
  // Predicated region
  $region10: #{speaker_match.1} parent=0 // pred_check
    _
  $region11: #{speaker_match.1} parent=0 // pred_check_branch
    %322 = sbr.rel (0) target = $region13
  $region12: #{speaker_match.1} parent=0 // pred_region
    _
  $region13: #{speaker_match.1} parent=0 // pred_fallthru
    _
  // Predicated region
  $region14: #{speaker_match.1} parent=0 // pred_check
    _
  $region15: #{speaker_match.1} parent=0 // pred_check_branch
    %324 = sbr.rel (0) target = $region17
  $region16: #{speaker_match.1} parent=0 // pred_region
    _
  $region17: #{speaker_match.1} parent=0 // pred_fallthru
    _

</llo_original>
